<compile_context>
chip_gen: v5e
topology: v5e:2x2
jax: 0.10.0
libtpu: 0.0.40
codegen_flags: <defaults>
</compile_context>

<pallas_src>
import numpy as np
import jax
import jax.numpy as jnp
from jax.experimental import pallas as pl
from jax.experimental.pallas import tpu as pltpu


# ---------------------------------------------------------------------------
# Kernel: one lane-dense batch tile, everything on the MXU / EUP.
# ---------------------------------------------------------------------------
def _mech_ss_kernel(xt_ref, ut_ref, w1x_ref, w1u_ref, b1_ref,
                    wq_ref, wv_ref, bq_ref, o_ref):
    xt = xt_ref[...]                                            # (n_x, TB) f32
    ut = ut_ref[...]                                            # (n_u, TB) f32

    # Hidden layer: h = tanh(W1x @ x^T + W1u @ u^T + b1)        # (hidden, TB)
    h = jnp.tanh(
        jnp.dot(w1x_ref[...], xt, preferred_element_type=jnp.float32)
        + jnp.dot(w1u_ref[...], ut, preferred_element_type=jnp.float32)
        + b1_ref[...])

    # dx^T = W_q @ x^T + W_v @ h + b_aug  -> aligned (n_out, TB) block:
    #   rows 0..n_dof-1  = ts * x[:, n_dof:]^T   (dq)
    #   rows n_dof..     = W2 @ h + b2           (dv)
    o_ref[...] = (
        jnp.dot(wq_ref[...], xt, preferred_element_type=jnp.float32)
        + jnp.dot(wv_ref[...], h, preferred_element_type=jnp.float32)
        + bq_ref[...]).astype(o_ref.dtype)


# ---------------------------------------------------------------------------
# Batch-tile selection: large lane-dense tiles, >= 2 (even) grid steps.
# ---------------------------------------------------------------------------
def _round_up(a, b):
    return (a + b - 1) // b * b


def _choose_batch_tiling(B, tb_target=4096, min_steps=2):
    B128 = _round_up(max(B, 1), 128)
    n_steps = max(1, -(-B128 // tb_target))
    if B128 >= min_steps * 128:
        n_steps = max(n_steps, min_steps)          # >= 2 steps: v7x megacore
    if n_steps > 1 and n_steps % 2:                # even step count
        n_steps += 1
    tb = _round_up(-(-B128 // n_steps), 128)
    n_steps = -(-B128 // tb)
    B_pad = tb * n_steps
    return tb, n_steps, B_pad


# ---------------------------------------------------------------------------
# Wrapper.
# ---------------------------------------------------------------------------
def mechanical_state_space_forward(x, u, w1, b1, w2, b2, *, n_dof, ts=1.0,
                                   tb_target=4096, return_transposed=False):
    B = x.shape[0]
    n_x = 2 * n_dof
    n_u = n_dof
    n_out = 2 * n_dof
    hidden = w1.shape[0]

    tb, n_steps, B_pad = _choose_batch_tiling(B, tb_target=tb_target)

    # --- inputs: transpose so lanes = batch (no concat, pad only remainder) ---
    xt = x.astype(jnp.float32).T                                # (n_x, B)
    ut = u.astype(jnp.float32).T                                # (n_u, B)
    if B_pad != B:
        xt = jnp.pad(xt, ((0, 0), (0, B_pad - B)))
        ut = jnp.pad(ut, ((0, 0), (0, B_pad - B)))

    # --- tiny weight prep (stays VMEM-resident across the batch grid) ---
    w1 = w1.astype(jnp.float32)
    w1x = w1[:, :n_x]                                           # (hidden, n_x)
    w1u = w1[:, n_x:]                                           # (hidden, n_u)
    b1c = b1.astype(jnp.float32).reshape(hidden, 1)             # (hidden, 1)

    wq = jnp.zeros((n_out, n_x), jnp.float32).at[:n_dof, n_dof:].set(
        jnp.float32(ts) * jnp.eye(n_dof, dtype=jnp.float32))    # (n_out, n_x)
    wv = jnp.concatenate(
        [jnp.zeros((n_dof, hidden), jnp.float32),
         w2.astype(jnp.float32)], axis=0)                       # (n_out, hidden)
    bq = jnp.concatenate(
        [jnp.zeros((n_dof,), jnp.float32),
         b2.astype(jnp.float32)], axis=0).reshape(n_out, 1)     # (n_out, 1)

    out_t = pl.pallas_call(
        _mech_ss_kernel,
        out_shape=jax.ShapeDtypeStruct((n_out, B_pad), jnp.float32),
        grid_spec=pltpu.PrefetchScalarGridSpec(
            num_scalar_prefetch=0,
            grid=(n_steps,),
            in_specs=[
                pl.BlockSpec((n_x, tb), lambda i: (0, i)),        # x^T tile
                pl.BlockSpec((n_u, tb), lambda i: (0, i)),        # u^T tile
                pl.BlockSpec((hidden, n_x), lambda i: (0, 0)),    # W1x (resident)
                pl.BlockSpec((hidden, n_u), lambda i: (0, 0)),    # W1u (resident)
                pl.BlockSpec((hidden, 1), lambda i: (0, 0)),      # b1
                pl.BlockSpec((n_out, n_x), lambda i: (0, 0)),     # W_q (resident)
                pl.BlockSpec((n_out, hidden), lambda i: (0, 0)),  # W_v (resident)
                pl.BlockSpec((n_out, 1), lambda i: (0, 0)),       # b_aug
            ],
            out_specs=pl.BlockSpec((n_out, tb), lambda i: (0, i)),
        ),
        compiler_params=pltpu.CompilerParams(
            dimension_semantics=("parallel",)),                   # megacore on v7x
    )(xt, ut, w1x, w1u, b1c, wq, wv, bq)

    out_t = out_t[:, :B]                                          # (n_out, B)
    if return_transposed:
        return out_t           # keep (feature, batch) layout across time steps
    return out_t.T                                                # (B, 2*n_dof)


if __name__ == "__main__":
    # ---- module configuration (matches the PyTorch defaults) ----
    n_dof, hidden_size, ts = 7, 64, 1.0
    n_x, n_u = 2 * n_dof, n_dof          # x: (B, 14), u: (B, 7)

    # ---- deterministic parameter init (init_small: N(0, 0.001), bias = 0) ----
    key = jax.random.PRNGKey(0)
    k1, k2, kx, ku = jax.random.split(key, 4)
    w1 = 0.001 * jax.random.normal(k1, (hidden_size, 3 * n_dof), jnp.float32)
    b1 = jnp.zeros((hidden_size,), jnp.float32)
    w2 = 0.001 * jax.random.normal(k2, (n_dof, hidden_size), jnp.float32)
    b2 = jnp.zeros((n_dof,), jnp.float32)

    # ---- example inputs: 2 lane-dense grid steps -> both TCs on v7x ----
    batch = 256
    x = jax.random.normal(kx, (batch, n_x), jnp.float32)
    u = jax.random.normal(ku, (batch, n_u), jnp.float32)

    # ---- run the Pallas kernel ----
    dx = mechanical_state_space_forward(x, u, w1, b1, w2, b2, n_dof=n_dof, ts=ts)
    dx = jax.block_until_ready(dx)

    # ---- numpy reference (same semantics as the PyTorch forward) ----
    xn, un = np.asarray(x), np.asarray(u)
    xun = np.concatenate([xn, un], axis=-1)
    hn = np.tanh(xun @ np.asarray(w1).T + np.asarray(b1))
    dvn = hn @ np.asarray(w2).T + np.asarray(b2)
    dqn = ts * xn[:, n_dof:]
    dx_ref = np.concatenate([dqn, dvn], axis=-1)

    assert dx.shape == (batch, 2 * n_dof)
    assert np.allclose(np.asarray(dx), dx_ref, rtol=1e-4, atol=1e-5)
    print("KERNEL_OK")
</pallas_src>

<mosaic_0001>
module attributes {stable_mosaic.version = 11 : i64} {
  func.func @_mech_ss_kernel(%arg0: i32, %arg1: memref<14x128xf32, #tpu.memory_space<vmem>>, %arg2: memref<7x128xf32, #tpu.memory_space<vmem>>, %arg3: memref<64x14xf32, #tpu.memory_space<vmem>>, %arg4: memref<64x7xf32, #tpu.memory_space<vmem>>, %arg5: memref<64x1xf32, #tpu.memory_space<vmem>>, %arg6: memref<14x14xf32, #tpu.memory_space<vmem>>, %arg7: memref<14x64xf32, #tpu.memory_space<vmem>>, %arg8: memref<14x1xf32, #tpu.memory_space<vmem>>, %arg9: memref<14x128xf32, #tpu.memory_space<vmem>>) attributes {dimension_semantics = [#tpu.dimension_semantics<parallel>], iteration_bounds = array<i64: 2>, scalar_prefetch = 0 : i64, scratch_operands = 0 : i64, tpu.core_type = #tpu.core_type<tc>, window_params = [{transform_indices = @transform_0, window_bounds = array<i64: 14, 128>}, {transform_indices = @transform_1, window_bounds = array<i64: 7, 128>}, {pipeline_mode = #tpu.pipeline_mode<synchronous>, transform_indices = @transform_2, window_bounds = array<i64: 64, 14>}, {pipeline_mode = #tpu.pipeline_mode<synchronous>, transform_indices = @transform_3, window_bounds = array<i64: 64, 7>}, {pipeline_mode = #tpu.pipeline_mode<synchronous>, transform_indices = @transform_4, window_bounds = array<i64: 64, 1>}, {pipeline_mode = #tpu.pipeline_mode<synchronous>, transform_indices = @transform_5, window_bounds = array<i64: 14, 14>}, {pipeline_mode = #tpu.pipeline_mode<synchronous>, transform_indices = @transform_6, window_bounds = array<i64: 14, 64>}, {pipeline_mode = #tpu.pipeline_mode<synchronous>, transform_indices = @transform_7, window_bounds = array<i64: 14, 1>}, {transform_indices = @transform_8, window_bounds = array<i64: 14, 128>}]} {
    %c0 = arith.constant 0 : index
    %c0_0 = arith.constant 0 : index
    %0 = vector.load %arg1[%c0, %c0_0] : memref<14x128xf32, #tpu.memory_space<vmem>>, vector<14x128xf32>
    %c0_1 = arith.constant 0 : index
    %c0_2 = arith.constant 0 : index
    %1 = vector.load %arg2[%c0_1, %c0_2] : memref<7x128xf32, #tpu.memory_space<vmem>>, vector<7x128xf32>
    %c0_3 = arith.constant 0 : index
    %c0_4 = arith.constant 0 : index
    %2 = vector.load %arg3[%c0_3, %c0_4] : memref<64x14xf32, #tpu.memory_space<vmem>>, vector<64x14xf32>
    %cst = arith.constant dense<0.000000e+00> : vector<64x128xf32>
    %3 = tpu.matmul %2, %0, %cst {dimension_numbers = #tpu.dot_dimension_numbers<[1], [0], [0], [1], [0, 0, 1, 1], [], []>} : vector<64x14xf32>, vector<14x128xf32>, vector<64x128xf32> -> vector<64x128xf32>
    %c0_5 = arith.constant 0 : index
    %c0_6 = arith.constant 0 : index
    %4 = vector.load %arg4[%c0_5, %c0_6] : memref<64x7xf32, #tpu.memory_space<vmem>>, vector<64x7xf32>
    %cst_7 = arith.constant dense<0.000000e+00> : vector<64x128xf32>
    %5 = tpu.matmul %4, %1, %cst_7 {dimension_numbers = #tpu.dot_dimension_numbers<[1], [0], [0], [1], [0, 0, 1, 1], [], []>} : vector<64x7xf32>, vector<7x128xf32>, vector<64x128xf32> -> vector<64x128xf32>
    %6 = arith.addf %3, %5 : vector<64x128xf32>
    %c0_8 = arith.constant 0 : index
    %c0_9 = arith.constant 0 : index
    %7 = vector.load %arg5[%c0_8, %c0_9] : memref<64x1xf32, #tpu.memory_space<vmem>>, vector<64x1xf32>
    %8 = vector.broadcast %7 : vector<64x1xf32> to vector<64x128xf32>
    %9 = arith.addf %6, %8 : vector<64x128xf32>
    %10 = math.tanh %9 : vector<64x128xf32>
    %c0_10 = arith.constant 0 : index
    %c0_11 = arith.constant 0 : index
    %11 = vector.load %arg6[%c0_10, %c0_11] : memref<14x14xf32, #tpu.memory_space<vmem>>, vector<14x14xf32>
    %cst_12 = arith.constant dense<0.000000e+00> : vector<14x128xf32>
    %12 = tpu.matmul %11, %0, %cst_12 {dimension_numbers = #tpu.dot_dimension_numbers<[1], [0], [0], [1], [0, 0, 1, 1], [], []>} : vector<14x14xf32>, vector<14x128xf32>, vector<14x128xf32> -> vector<14x128xf32>
    %c0_13 = arith.constant 0 : index
    %c0_14 = arith.constant 0 : index
    %13 = vector.load %arg7[%c0_13, %c0_14] : memref<14x64xf32, #tpu.memory_space<vmem>>, vector<14x64xf32>
    %cst_15 = arith.constant dense<0.000000e+00> : vector<14x128xf32>
    %14 = tpu.matmul %13, %10, %cst_15 {dimension_numbers = #tpu.dot_dimension_numbers<[1], [0], [0], [1], [0, 0, 1, 1], [], []>} : vector<14x64xf32>, vector<64x128xf32>, vector<14x128xf32> -> vector<14x128xf32>
    %15 = arith.addf %12, %14 : vector<14x128xf32>
    %c0_16 = arith.constant 0 : index
    %c0_17 = arith.constant 0 : index
    %16 = vector.load %arg8[%c0_16, %c0_17] : memref<14x1xf32, #tpu.memory_space<vmem>>, vector<14x1xf32>
    %17 = vector.broadcast %16 : vector<14x1xf32> to vector<14x128xf32>
    %18 = arith.addf %15, %17 : vector<14x128xf32>
    %c0_18 = arith.constant 0 : index
    %c0_19 = arith.constant 0 : index
    %19 = vector.load %arg9[%c0_18, %c0_19] : memref<14x128xf32, #tpu.memory_space<vmem>>, vector<14x128xf32>
    tpu.vector_store %arg9[%c0_18, %c0_19], %18 {strides = array<i32>} : memref<14x128xf32, #tpu.memory_space<vmem>>, vector<14x128xf32>,
    return
  }
  func.func @transform_0(%arg0: i32) -> (i32, i32) {
    %c0_i32 = arith.constant 0 : i32
    %c0_i32_0 = arith.constant 0 : i32
    return %c0_i32, %arg0 : i32, i32
  }
  func.func @transform_1(%arg0: i32) -> (i32, i32) {
    %c0_i32 = arith.constant 0 : i32
    %c0_i32_0 = arith.constant 0 : i32
    return %c0_i32, %arg0 : i32, i32
  }
  func.func @transform_2(%arg0: i32) -> (i32, i32) {
    %c0_i32 = arith.constant 0 : i32
    %c0_i32_0 = arith.constant 0 : i32
    %c0_i32_1 = arith.constant 0 : i32
    return %c0_i32, %c0_i32_0 : i32, i32
  }
  func.func @transform_3(%arg0: i32) -> (i32, i32) {
    %c0_i32 = arith.constant 0 : i32
    %c0_i32_0 = arith.constant 0 : i32
    %c0_i32_1 = arith.constant 0 : i32
    return %c0_i32, %c0_i32_0 : i32, i32
  }
  func.func @transform_4(%arg0: i32) -> (i32, i32) {
    %c0_i32 = arith.constant 0 : i32
    %c0_i32_0 = arith.constant 0 : i32
    %c0_i32_1 = arith.constant 0 : i32
    return %c0_i32, %c0_i32_0 : i32, i32
  }
  func.func @transform_5(%arg0: i32) -> (i32, i32) {
    %c0_i32 = arith.constant 0 : i32
    %c0_i32_0 = arith.constant 0 : i32
    %c0_i32_1 = arith.constant 0 : i32
    return %c0_i32, %c0_i32_0 : i32, i32
  }
  func.func @transform_6(%arg0: i32) -> (i32, i32) {
    %c0_i32 = arith.constant 0 : i32
    %c0_i32_0 = arith.constant 0 : i32
    %c0_i32_1 = arith.constant 0 : i32
    return %c0_i32, %c0_i32_0 : i32, i32
  }
  func.func @transform_7(%arg0: i32) -> (i32, i32) {
    %c0_i32 = arith.constant 0 : i32
    %c0_i32_0 = arith.constant 0 : i32
    %c0_i32_1 = arith.constant 0 : i32
    return %c0_i32, %c0_i32_0 : i32, i32
  }
  func.func @transform_8(%arg0: i32) -> (i32, i32) {
    %c0_i32 = arith.constant 0 : i32
    %c0_i32_0 = arith.constant 0 : i32
    return %c0_i32, %arg0 : i32, i32
  }
}

</mosaic_0001>

<llo_original>
// kernel: tpu_custom_call.1
$region0: #{tpu_custom_call.1}
  #allocation0 [shape = 'u32[]', space=smem, size = 0x4, offset = 0x4, fixed_abs, tag = 'smem constant byte address 0x4 - core index']
  #allocation1 [shape = 'u32[72,128]{1,0:T(1,128)}', space=vmem, size = 0x9000, scoped, tag = 'internal scratch']
  %s0 = inlined_call_operand.vmem [shape: f32[14,256], index: 0, kind: input, shape index: {}]
  %s1 = inlined_call_operand.vmem [shape: f32[7,256], index: 1, kind: input, shape index: {}]
  %s2 = inlined_call_operand.vmem [shape: f32[64,14], index: 2, kind: input, shape index: {}]
  %s3 = inlined_call_operand.vmem [shape: f32[64,7], index: 3, kind: input, shape index: {}]
  %s4 = inlined_call_operand.vmem [shape: f32[64,1], index: 4, kind: input, shape index: {}]
  %s5 = inlined_call_operand.vmem [shape: f32[14,14], index: 5, kind: input, shape index: {}]
  %s6 = inlined_call_operand.vmem [shape: f32[14,64], index: 6, kind: input, shape index: {}]
  %s7 = inlined_call_operand.vmem [shape: f32[14,1], index: 7, kind: input, shape index: {}]
  %s8 = inlined_call_operand.hbm [shape: f32[14,256], index: 8, kind: output, shape index: {}]
  %s9 = sld [smem:[#allocation0]]
  $region103: #{tpu_custom_call.1} parent=0
    _
  %s11 = ssub.s32 1, %s9
  %s12 = scalar_select 0, %s11, %s9
  $region1: #{tpu_custom_call.1} parent=0
    #allocation2 [shape = 'u8[16384]{0}', space=vmem, size = 0x4000, scoped, tag = 'input window, operand 0']
    #allocation3 [shape = 'u8[16384]{0}', space=vmem, size = 0x4000, scoped, tag = 'output window, operand 0']
    #allocation4 [shape = 's32[2]{0}', space=sflag, size = 0x8, scoped, tag = 'scoped memory for tpu_custom_call.1']
    %13 = vsyncpa [#allocation4], 0
    %s14 = scalar_lea.sflag [#allocation4], 1
    %15 = vsyncpa %s14, 0
    loop: start=0, step=1, limit=4
    $region2: #{tpu_custom_call.1} parent=1 // loop_pre_header
      _
    $region3: #{tpu_custom_call.1} parent=1 // loop_header
      %s17 = sphi 0, %s21
      %p18 = scmp.ge.s32.totalorder %s17, 4
      %s27 = sphi 0, %s29
      %s30 = sphi 0, %s27
      %s31 = sphi 0, %s30
      %s47 = sphi 0, %s31
      %s53 = sphi 0, %s55
      %s56 = sphi 0, %s53
      %s57 = sphi 0, %s56
      %s73 = sphi 0, %s57
      %s77 = sphi 0, %s77
      %s79 = sphi 0, %s77
      %s80 = sphi 0, %s79
      %s94 = sphi 0, %s80
      %s98 = sphi 0, %s98
      %s100 = sphi 0, %s98
      %s101 = sphi 0, %s100
      %s115 = sphi 0, %s101
      %s119 = sphi 0, %s119
      %s121 = sphi 0, %s119
      %s122 = sphi 0, %s121
      %s136 = sphi 0, %s122
      %s140 = sphi 0, %s140
      %s142 = sphi 0, %s140
      %s143 = sphi 0, %s142
      %s157 = sphi 0, %s143
      %s161 = sphi 0, %s161
      %s163 = sphi 0, %s161
      %s164 = sphi 0, %s163
      %s178 = sphi 0, %s164
      %s182 = sphi 0, %s182
      %s184 = sphi 0, %s182
      %s185 = sphi 0, %s184
      %s199 = sphi 0, %s185
      %s205 = sphi 0, %s207
      %s208 = sphi 0, %s205
      %s209 = sphi 0, %s208
      %s225 = sphi 0, %s209
    $region4: #{tpu_custom_call.1} parent=1 // loop_header_branch
      %20 = sbr.rel (%p18) target = $region8
    $region5: #{tpu_custom_call.1} parent=1 // loop_body
      %s22 = ssub.s32 %s17, 1
      %s23 = ssub.s32 %s17, 2
      %s24 = sadd.s32 %s17, 1
      %s25 = ssub.s32 %s17, %s24
      %p26 = scmp.eq.s32.totalorder %s25, 0
      %s28 = sadd.s32 %s27, 1
      %s29 = scalar_select %p26, %s27, %s28
      %p32 = pneg %p26
      %p33 = scmp.eq.s32.totalorder %s17, 1
      %p34 = por %p32, %p33
      %p35 = scmp.ne.s32.totalorder %s27, %s30
      %p36 = scmp.eq.s32.totalorder %s17, 0
      %p37 = por %p35, %p36
      %p38 = scmp.ne.s32.totalorder %s27, %s30
      %p39 = scmp.eq.s32.totalorder %s22, 1
      %p40 = por %p38, %p39
      %p41 = scmp.ne.s32.totalorder %s30, %s31
      %p42 = scmp.eq.s32.totalorder %s22, 0
      %p43 = por %p41, %p42
      %p44 = scmp.ne.s32.totalorder %s30, %s31
      %p45 = scmp.eq.s32.totalorder %s23, 1
      %p46 = por %p44, %p45
      %p48 = scmp.ne.s32.totalorder %s31, %s47
      %p49 = scmp.eq.s32.totalorder %s23, 0
      %p50 = por %p48, %p49
      %s51 = ssub.s32 %s17, %s24
      %p52 = scmp.eq.s32.totalorder %s51, 0
      %s54 = sadd.s32 %s53, 1
      %s55 = scalar_select %p52, %s53, %s54
      %p58 = pneg %p52
      %p59 = scmp.eq.s32.totalorder %s17, 1
      %p60 = por %p58, %p59
      %p61 = scmp.ne.s32.totalorder %s53, %s56
      %p62 = scmp.eq.s32.totalorder %s17, 0
      %p63 = por %p61, %p62
      %p64 = scmp.ne.s32.totalorder %s53, %s56
      %p65 = scmp.eq.s32.totalorder %s22, 1
      %p66 = por %p64, %p65
      %p67 = scmp.ne.s32.totalorder %s56, %s57
      %p68 = scmp.eq.s32.totalorder %s22, 0
      %p69 = por %p67, %p68
      %p70 = scmp.ne.s32.totalorder %s56, %s57
      %p71 = scmp.eq.s32.totalorder %s23, 1
      %p72 = por %p70, %p71
      %p74 = scmp.ne.s32.totalorder %s57, %s73
      %p75 = scmp.eq.s32.totalorder %s23, 0
      %p76 = por %p74, %p75
      %s78 = sadd.s32 %s77, 1
      %p81 = scmp.eq.s32.totalorder %s17, 1
      %p82 = scmp.ne.s32.totalorder %s77, %s79
      %p83 = scmp.eq.s32.totalorder %s17, 0
      %p84 = por %p82, %p83
      %p85 = scmp.ne.s32.totalorder %s77, %s79
      %p86 = scmp.eq.s32.totalorder %s22, 1
      %p87 = por %p85, %p86
      %p88 = scmp.ne.s32.totalorder %s79, %s80
      %p89 = scmp.eq.s32.totalorder %s22, 0
      %p90 = por %p88, %p89
      %p91 = scmp.ne.s32.totalorder %s79, %s80
      %p92 = scmp.eq.s32.totalorder %s23, 1
      %p93 = por %p91, %p92
      %p95 = scmp.ne.s32.totalorder %s80, %s94
      %p96 = scmp.eq.s32.totalorder %s23, 0
      %p97 = por %p95, %p96
      %s99 = sadd.s32 %s98, 1
      %p102 = scmp.eq.s32.totalorder %s17, 1
      %p103 = scmp.ne.s32.totalorder %s98, %s100
      %p104 = scmp.eq.s32.totalorder %s17, 0
      %p105 = por %p103, %p104
      %p106 = scmp.ne.s32.totalorder %s98, %s100
      %p107 = scmp.eq.s32.totalorder %s22, 1
      %p108 = por %p106, %p107
      %p109 = scmp.ne.s32.totalorder %s100, %s101
      %p110 = scmp.eq.s32.totalorder %s22, 0
      %p111 = por %p109, %p110
      %p112 = scmp.ne.s32.totalorder %s100, %s101
      %p113 = scmp.eq.s32.totalorder %s23, 1
      %p114 = por %p112, %p113
      %p116 = scmp.ne.s32.totalorder %s101, %s115
      %p117 = scmp.eq.s32.totalorder %s23, 0
      %p118 = por %p116, %p117
      %s120 = sadd.s32 %s119, 1
      %p123 = scmp.eq.s32.totalorder %s17, 1
      %p124 = scmp.ne.s32.totalorder %s119, %s121
      %p125 = scmp.eq.s32.totalorder %s17, 0
      %p126 = por %p124, %p125
      %p127 = scmp.ne.s32.totalorder %s119, %s121
      %p128 = scmp.eq.s32.totalorder %s22, 1
      %p129 = por %p127, %p128
      %p130 = scmp.ne.s32.totalorder %s121, %s122
      %p131 = scmp.eq.s32.totalorder %s22, 0
      %p132 = por %p130, %p131
      %p133 = scmp.ne.s32.totalorder %s121, %s122
      %p134 = scmp.eq.s32.totalorder %s23, 1
      %p135 = por %p133, %p134
      %p137 = scmp.ne.s32.totalorder %s122, %s136
      %p138 = scmp.eq.s32.totalorder %s23, 0
      %p139 = por %p137, %p138
      %s141 = sadd.s32 %s140, 1
      %p144 = scmp.eq.s32.totalorder %s17, 1
      %p145 = scmp.ne.s32.totalorder %s140, %s142
      %p146 = scmp.eq.s32.totalorder %s17, 0
      %p147 = por %p145, %p146
      %p148 = scmp.ne.s32.totalorder %s140, %s142
      %p149 = scmp.eq.s32.totalorder %s22, 1
      %p150 = por %p148, %p149
      %p151 = scmp.ne.s32.totalorder %s142, %s143
      %p152 = scmp.eq.s32.totalorder %s22, 0
      %p153 = por %p151, %p152
      %p154 = scmp.ne.s32.totalorder %s142, %s143
      %p155 = scmp.eq.s32.totalorder %s23, 1
      %p156 = por %p154, %p155
      %p158 = scmp.ne.s32.totalorder %s143, %s157
      %p159 = scmp.eq.s32.totalorder %s23, 0
      %p160 = por %p158, %p159
      %s162 = sadd.s32 %s161, 1
      %p165 = scmp.eq.s32.totalorder %s17, 1
      %p166 = scmp.ne.s32.totalorder %s161, %s163
      %p167 = scmp.eq.s32.totalorder %s17, 0
      %p168 = por %p166, %p167
      %p169 = scmp.ne.s32.totalorder %s161, %s163
      %p170 = scmp.eq.s32.totalorder %s22, 1
      %p171 = por %p169, %p170
      %p172 = scmp.ne.s32.totalorder %s163, %s164
      %p173 = scmp.eq.s32.totalorder %s22, 0
      %p174 = por %p172, %p173
      %p175 = scmp.ne.s32.totalorder %s163, %s164
      %p176 = scmp.eq.s32.totalorder %s23, 1
      %p177 = por %p175, %p176
      %p179 = scmp.ne.s32.totalorder %s164, %s178
      %p180 = scmp.eq.s32.totalorder %s23, 0
      %p181 = por %p179, %p180
      %s183 = sadd.s32 %s182, 1
      %p186 = scmp.eq.s32.totalorder %s17, 1
      %p187 = scmp.ne.s32.totalorder %s182, %s184
      %p188 = scmp.eq.s32.totalorder %s17, 0
      %p189 = por %p187, %p188
      %p190 = scmp.ne.s32.totalorder %s182, %s184
      %p191 = scmp.eq.s32.totalorder %s22, 1
      %p192 = por %p190, %p191
      %p193 = scmp.ne.s32.totalorder %s184, %s185
      %p194 = scmp.eq.s32.totalorder %s22, 0
      %p195 = por %p193, %p194
      %p196 = scmp.ne.s32.totalorder %s184, %s185
      %p197 = scmp.eq.s32.totalorder %s23, 1
      %p198 = por %p196, %p197
      %p200 = scmp.ne.s32.totalorder %s185, %s199
      %p201 = scmp.eq.s32.totalorder %s23, 0
      %p202 = por %p200, %p201
      %s203 = ssub.s32 %s17, %s24
      %p204 = scmp.eq.s32.totalorder %s203, 0
      %s206 = sadd.s32 %s205, 1
      %s207 = scalar_select %p204, %s205, %s206
      %p210 = pneg %p204
      %p211 = scmp.eq.s32.totalorder %s17, 1
      %p212 = por %p210, %p211
      %p213 = scmp.ne.s32.totalorder %s205, %s208
      %p214 = scmp.eq.s32.totalorder %s17, 0
      %p215 = por %p213, %p214
      %p216 = scmp.ne.s32.totalorder %s205, %s208
      %p217 = scmp.eq.s32.totalorder %s22, 1
      %p218 = por %p216, %p217
      %p219 = scmp.ne.s32.totalorder %s208, %s209
      %p220 = scmp.eq.s32.totalorder %s22, 0
      %p221 = por %p219, %p220
      %p222 = scmp.ne.s32.totalorder %s208, %s209
      %p223 = scmp.eq.s32.totalorder %s23, 1
      %p224 = por %p222, %p223
      %p226 = scmp.ne.s32.totalorder %s209, %s225
      %p227 = scmp.eq.s32.totalorder %s23, 0
      %p228 = por %p226, %p227
      %p229 = scmp.le.s32.totalorder 1, %s17
      %p230 = scmp.lt.s32.totalorder %s17, 3
      %p231 = pnand %p229, %p230
      %p232 = pneg %p231
      // Predicated region
      $region9: #{tpu_custom_call.1} parent=5 // pred_check
        _
      $region10: #{tpu_custom_call.1} parent=5 // pred_check_branch
        %234 = sbr.rel (%p231) target = $region12
      $region11: #{tpu_custom_call.1} parent=5 // pred_region
        %s235 = ssub.s32 %s17, 1
        // Predicated region
        $region13: #{tpu_custom_call.1} parent=11 // pred_check
          %p236 = pneg %p90
        $region14: #{tpu_custom_call.1} parent=11 // pred_check_branch
          %238 = sbr.rel (%p236) target = $region16
        $region15: #{tpu_custom_call.1} parent=11 // pred_region
          _
        $region16: #{tpu_custom_call.1} parent=11 // pred_fallthru
          _
        // Predicated region
        $region17: #{tpu_custom_call.1} parent=11 // pred_check
          %p239 = pneg %p111
        $region18: #{tpu_custom_call.1} parent=11 // pred_check_branch
          %241 = sbr.rel (%p239) target = $region20
        $region19: #{tpu_custom_call.1} parent=11 // pred_region
          _
        $region20: #{tpu_custom_call.1} parent=11 // pred_fallthru
          _
        // Predicated region
        $region21: #{tpu_custom_call.1} parent=11 // pred_check
          %p242 = pneg %p132
        $region22: #{tpu_custom_call.1} parent=11 // pred_check_branch
          %244 = sbr.rel (%p242) target = $region24
        $region23: #{tpu_custom_call.1} parent=11 // pred_region
          _
        $region24: #{tpu_custom_call.1} parent=11 // pred_fallthru
          _
        // Predicated region
        $region25: #{tpu_custom_call.1} parent=11 // pred_check
          %p245 = pneg %p153
        $region26: #{tpu_custom_call.1} parent=11 // pred_check_branch
          %247 = sbr.rel (%p245) target = $region28
        $region27: #{tpu_custom_call.1} parent=11 // pred_region
          _
        $region28: #{tpu_custom_call.1} parent=11 // pred_fallthru
          _
        // Predicated region
        $region29: #{tpu_custom_call.1} parent=11 // pred_check
          %p248 = pneg %p174
        $region30: #{tpu_custom_call.1} parent=11 // pred_check_branch
          %250 = sbr.rel (%p248) target = $region32
        $region31: #{tpu_custom_call.1} parent=11 // pred_region
          _
        $region32: #{tpu_custom_call.1} parent=11 // pred_fallthru
          _
        // Predicated region
        $region33: #{tpu_custom_call.1} parent=11 // pred_check
          %p251 = pneg %p195
        $region34: #{tpu_custom_call.1} parent=11 // pred_check_branch
          %253 = sbr.rel (%p251) target = $region36
        $region35: #{tpu_custom_call.1} parent=11 // pred_region
          _
        $region36: #{tpu_custom_call.1} parent=11 // pred_fallthru
          _
      $region12: #{tpu_custom_call.1} parent=5 // pred_fallthru
        _
      %p254 = scmp.lt.s32.totalorder %s17, 2
      // Predicated region
      $region37: #{tpu_custom_call.1} parent=5 // pred_check
        %p255 = pneg %p254
      $region38: #{tpu_custom_call.1} parent=5 // pred_check_branch
        %257 = sbr.rel (%p255) target = $region40
      $region39: #{tpu_custom_call.1} parent=5 // pred_region
        // Predicated region
        $region41: #{tpu_custom_call.1} parent=39 // pred_check
          %p258 = pneg %p37
        $region42: #{tpu_custom_call.1} parent=39 // pred_check_branch
          %260 = sbr.rel (%p258) target = $region44
        $region43: #{tpu_custom_call.1} parent=39 // pred_region
          %s261 = sand.u32 %s27, 1
          %s262 = sand.u32 %s27, 1
          %s263 = smul.addr %s262, 16
          %s264 = scalar_lea.vmem [#allocation2], %s263
          %s265 = smul.addr %s17, 8
          %s266 = scalar_lea.vmem %s0, %s265
          // Predicated region
          $region45: #{tpu_custom_call.1} parent=43 // pred_check
            _
          $region46: #{tpu_custom_call.1} parent=43 // pred_check_branch
            %268 = sbr.rel (0) target = $region48
          $region47: #{tpu_custom_call.1} parent=43 // pred_region
            // Predicated region
            $region49: #{tpu_custom_call.1} parent=47 // pred_check
              _
            $region50: #{tpu_custom_call.1} parent=47 // pred_check_branch
              %270 = sbr.rel (0) target = $region52
            $region51: #{tpu_custom_call.1} parent=47 // pred_region
              // Predicated region
              $region64: #{tpu_custom_call.1} parent=51 // pred_check
                _
              $region65: #{tpu_custom_call.1} parent=51 // pred_check_branch
                %288 = sbr.rel (0) target = $region67
              $region66: #{tpu_custom_call.1} parent=51 // pred_region
                loop: start=0, step=1, limit=1
                $region68: #{tpu_custom_call.1} parent=66 // loop_pre_header
                  _
                $region69: #{tpu_custom_call.1} parent=66 // loop_header
                  %s290 = sphi 0, %s294
                  %p291 = scmp.ge.s32.totalorder %s290, 1
                  %s295 = sphi %s266, %s266
                  %s296 = sphi %s264, %s264
                $region70: #{tpu_custom_call.1} parent=66 // loop_header_branch
                  %293 = sbr.rel (%p291) target = $region74
                $region71: #{tpu_custom_call.1} parent=66 // loop_body
                  %v297 = vld [vmem:[%s295] sm:$0xff]
                  %298 = vst [vmem:[%s296] sm:$0xff] %v297
                  %v299 = vld [vmem:[%s295 + $0x10] sm:$0xff]
                  %300 = vst [vmem:[%s296 + $0x8] sm:$0xff] %v299
                $region72: #{tpu_custom_call.1} parent=66 // loop_footer
                  %s294 = sadd.s32 1, %s290
                $region73: #{tpu_custom_call.1} parent=66 // loop_footer_branch
                  %289 = sbr.rel target = $region69
                $region74: #{tpu_custom_call.1} parent=66 // loop_exit
                  _
              $region67: #{tpu_custom_call.1} parent=51 // pred_fallthru
                _
              // Predicated region
              $region75: #{tpu_custom_call.1} parent=51 // pred_check
                _
              $region76: #{tpu_custom_call.1} parent=51 // pred_check_branch
                %302 = sbr.rel target = $region78
              $region77: #{tpu_custom_call.1} parent=51 // pred_region
                _
              $region78: #{tpu_custom_call.1} parent=51 // pred_fallthru
                _
            $region52: #{tpu_custom_call.1} parent=47 // pred_fallthru
              _
            // Predicated region
            $region53: #{tpu_custom_call.1} parent=47 // pred_check
              _
            $region54: #{tpu_custom_call.1} parent=47 // pred_check_branch
              %272 = sbr.rel target = $region56
            $region55: #{tpu_custom_call.1} parent=47 // pred_region
              %s274 = ssub.s32 256, 1
              loop: start=0, step=1, limit=1
              $region57: #{tpu_custom_call.1} parent=55 // loop_pre_header
                _
              $region58: #{tpu_custom_call.1} parent=55 // loop_header
                %s276 = sphi 0, %s280
                %p277 = scmp.ge.s32.totalorder %s276, 1
                %s281 = sphi %s266, %s266
                %s282 = sphi %s264, %s264
              $region59: #{tpu_custom_call.1} parent=55 // loop_header_branch
                %279 = sbr.rel (%p277) target = $region63
              $region60: #{tpu_custom_call.1} parent=55 // loop_body
                %v283 = vld [vmem:[%s281] sm:%s274]
                %284 = vst [vmem:[%s282] sm:%s274] %v283
                %v285 = vld [vmem:[%s281 + $0x10] sm:%s274]
                %286 = vst [vmem:[%s282 + $0x8] sm:%s274] %v285
              $region61: #{tpu_custom_call.1} parent=55 // loop_footer
                %s280 = sadd.s32 1, %s276
              $region62: #{tpu_custom_call.1} parent=55 // loop_footer_branch
                %275 = sbr.rel target = $region58
              $region63: #{tpu_custom_call.1} parent=55 // loop_exit
                _
            $region56: #{tpu_custom_call.1} parent=47 // pred_fallthru
              _
          $region48: #{tpu_custom_call.1} parent=43 // pred_fallthru
            _
          %303 = vnop
        $region44: #{tpu_custom_call.1} parent=39 // pred_fallthru
          _
        // Predicated region
        $region79: #{tpu_custom_call.1} parent=39 // pred_check
          %p304 = pneg %p63
        $region80: #{tpu_custom_call.1} parent=39 // pred_check_branch
          %306 = sbr.rel (%p304) target = $region82
        $region81: #{tpu_custom_call.1} parent=39 // pred_region
          %p307 = scmp.lt.s32.totalorder %s17, 1
          %s308 = scalar_select %p307, %s17, 1
          %s309 = smul.addr %s308, 8
          %s310 = scalar_lea.vmem %s1, %s309
        $region82: #{tpu_custom_call.1} parent=39 // pred_fallthru
          _
      $region40: #{tpu_custom_call.1} parent=5 // pred_fallthru
        _
      %p311 = scmp.le.s32.totalorder 1, %s17
      %p312 = scmp.lt.s32.totalorder %s17, 3
      %p313 = pnand %p311, %p312
      %p314 = pneg %p313
      // Predicated region
      $region83: #{tpu_custom_call.1} parent=5 // pred_check
        _
      $region84: #{tpu_custom_call.1} parent=5 // pred_check_branch
        %316 = sbr.rel (%p313) target = $region86
      $region85: #{tpu_custom_call.1} parent=5 // pred_region
        %s317 = ssub.s32 %s17, 1
        %s318 = sand.u32 %s30, 1
        %s319 = sand.u32 %s30, 1
        %s320 = smul.addr %s319, 16
        %s321 = scalar_lea.vmem [#allocation2], %s320
        // Predicated region
        $region87: #{tpu_custom_call.1} parent=85 // pred_check
          %p322 = pneg %p43
        $region88: #{tpu_custom_call.1} parent=85 // pred_check_branch
          %324 = sbr.rel (%p322) target = $region90
        $region89: #{tpu_custom_call.1} parent=85 // pred_region
          _
        $region90: #{tpu_custom_call.1} parent=85 // pred_fallthru
          _
        %s325 = sand.u32 %s30, 1
        %s326 = sand.u32 %s30, 1
        %s327 = smul.addr %s326, 16
        %s328 = scalar_lea.vmem [#allocation2], %s327
        %p329 = pneg %p43
        %p330 = pneg %p40
        %p331 = scmp.lt.s32.totalorder %s22, 1
        %s332 = scalar_select %p331, %s22, 1
        %s333 = smul.addr %s332, 8
        %s334 = scalar_lea.vmem %s1, %s333
        %p335 = pneg %p69
        %p336 = pneg %p66
        %p337 = pneg %p90
        %p338 = pneg %p87
        %p339 = pneg %p111
        %p340 = pneg %p108
        %p341 = pneg %p132
        %p342 = pneg %p129
        %p343 = pneg %p153
        %p344 = pneg %p150
        %p345 = pneg %p174
        %p346 = pneg %p171
        %p347 = pneg %p195
        %p348 = pneg %p192
        %p349 = pneg %p221
        %p350 = pneg %p218
        %s351 = sand.u32 %s208, 1
        %s352 = scalar_lea.sflag [#allocation4], %s351
        %s353 = sand.u32 %s208, 1
        %s354 = smul.addr %s353, 16
        %s355 = scalar_lea.vmem [#allocation3], %s354
        %p356 = scmp.lt.s32.totalorder %s22, 1
        %s357 = scalar_select %p356, %s22, 1
        %s358 = smul.addr %s357, 8
        %s359 = scalar_lea.vmem %s1, %s358
        %v360 = vld [vmem:[%s321] sm:$0xff]
        %v361 = vld [vmem:[%s321 + $0x8] sm:$0x3f]
        %v362 = vld [vmem:[%s359] sm:$0x7f]
        %v363 = vld [vmem:[%s2] sm:$0xff]
        %v364 = vld [vmem:[%s2 + $0x8] sm:$0xff]
        %v365 = vld [vmem:[%s2 + $0x10] sm:$0xff]
        %v366 = vld [vmem:[%s2 + $0x18] sm:$0xff]
        %v367 = vld [vmem:[%s2 + $0x20] sm:$0xff]
        %v368 = vld [vmem:[%s2 + $0x28] sm:$0xff]
        %v369 = vld [vmem:[%s2 + $0x30] sm:$0xff]
        %v370 = vld [vmem:[%s2 + $0x38] sm:$0xff]
        %v371 = vld [vmem:[%s3] sm:$0xff]
        %v372 = vld [vmem:[%s3 + $0x8] sm:$0xff]
        %v373 = vld [vmem:[%s3 + $0x10] sm:$0xff]
        %v374 = vld [vmem:[%s3 + $0x18] sm:$0xff]
        %v375 = vld [vmem:[%s3 + $0x20] sm:$0xff]
        %v376 = vld [vmem:[%s3 + $0x28] sm:$0xff]
        %v377 = vld [vmem:[%s3 + $0x30] sm:$0xff]
        %v378 = vld [vmem:[%s3 + $0x38] sm:$0xff]
        %vm379 = vcmask 56320
        %v381 = vsel %vm379, %v371, 0
        %v384 = vsel %vm379, %v372, 0
        %v387 = vsel %vm379, %v373, 0
        %v390 = vsel %vm379, %v374, 0
        %v393 = vsel %vm379, %v375, 0
        %v396 = vsel %vm379, %v376, 0
        %v399 = vsel %vm379, %v377, 0
        %v402 = vsel %vm379, %v378, 0
        %vm404 = vcmask 1046528
        %v406 = vsel %vm404, %v362, 0
        %408 = vmatpush.msra.mxu0 0.0
        %409 = vmatpush.msra.mxu0 0.0
        %410 = vmatpush.msra.mxu0 0.0
        %411 = vmatpush.msra.mxu0 0.0
        %412 = vmatpush.msra.mxu0 0.0
        %413 = vmatpush.msra.mxu0 0.0
        %414 = vmatpush.msra.mxu0 0.0
        %415 = vmatpush.msra.mxu0 0.0
        %416 = vmatpush.msra.mxu0 0.0
        %417 = vmatpush.msra.mxu0 0.0
        %418 = vmatpush.msra.mxu0 0.0
        %419 = vmatpush.msra.mxu0 0.0
        %420 = vmatpush.msra.mxu0 0.0
        %421 = vmatpush.msra.mxu0 0.0
        %422 = vmatpush.msra.mxu0 0.0
        %423 = vmatpush.msra.mxu0 %v406
        %424 = vmatmul.f32.gmra.mxu0 %v381
        %v425 = vpop.f32.mrf.mxu0
        %v426 = vadd.f32 0.0, %v425
        %427 = vmatmul.f32.gmra.mxu0 %v384
        %v428 = vpop.f32.mrf.mxu0
        %v429 = vadd.f32 0.0, %v428
        %430 = vmatmul.f32.gmra.mxu0 %v387
        %v431 = vpop.f32.mrf.mxu0
        %v432 = vadd.f32 0.0, %v431
        %433 = vmatmul.f32.gmra.mxu0 %v390
        %v434 = vpop.f32.mrf.mxu0
        %v435 = vadd.f32 0.0, %v434
        %436 = vmatmul.f32.gmra.mxu0 %v393
        %v437 = vpop.f32.mrf.mxu0
        %v438 = vadd.f32 0.0, %v437
        %439 = vmatmul.f32.gmra.mxu0 %v396
        %v440 = vpop.f32.mrf.mxu0
        %v441 = vadd.f32 0.0, %v440
        %442 = vmatmul.f32.gmra.mxu0 %v399
        %v443 = vpop.f32.mrf.mxu0
        %v444 = vadd.f32 0.0, %v443
        %445 = vmatmul.f32.gmra.mxu0 %v402
        %v446 = vpop.f32.mrf.mxu0
        %v447 = vadd.f32 0.0, %v446
        %448 = vdwg.mxu0
        %vm449 = vcmask 113664
        %v451 = vsel %vm449, %v363, 0
        %v454 = vsel %vm449, %v364, 0
        %v457 = vsel %vm449, %v365, 0
        %v460 = vsel %vm449, %v366, 0
        %v463 = vsel %vm449, %v367, 0
        %v466 = vsel %vm449, %v368, 0
        %v469 = vsel %vm449, %v369, 0
        %v472 = vsel %vm449, %v370, 0
        %vm474 = vcmask 1045504
        %v476 = vsel %vm474, %v361, 0
        %478 = vmatpush.msra.mxu0 0.0
        %479 = vmatpush.msra.mxu0 0.0
        %480 = vmatpush.msra.mxu0 0.0
        %481 = vmatpush.msra.mxu0 0.0
        %482 = vmatpush.msra.mxu0 0.0
        %483 = vmatpush.msra.mxu0 0.0
        %484 = vmatpush.msra.mxu0 0.0
        %485 = vmatpush.msra.mxu0 0.0
        %486 = vmatpush.msra.mxu0 0.0
        %487 = vmatpush.msra.mxu0 0.0
        %488 = vmatpush.msra.mxu0 0.0
        %489 = vmatpush.msra.mxu0 0.0
        %490 = vmatpush.msra.mxu0 0.0
        %491 = vmatpush.msra.mxu0 0.0
        %492 = vmatpush.msra.mxu0 %v476
        %493 = vmatpush.msra.mxu0 %v360
        %494 = vmatmul.f32.gmra.mxu0 %v451
        %v495 = vpop.f32.mrf.mxu0
        %v496 = vadd.f32 %v426, %v495
        %497 = vmatmul.f32.gmra.mxu0 %v454
        %v498 = vpop.f32.mrf.mxu0
        %v499 = vadd.f32 %v429, %v498
        %500 = vmatmul.f32.gmra.mxu0 %v457
        %v501 = vpop.f32.mrf.mxu0
        %v502 = vadd.f32 %v432, %v501
        %503 = vmatmul.f32.gmra.mxu0 %v460
        %v504 = vpop.f32.mrf.mxu0
        %v505 = vadd.f32 %v435, %v504
        %506 = vmatmul.f32.gmra.mxu0 %v463
        %v507 = vpop.f32.mrf.mxu0
        %v508 = vadd.f32 %v438, %v507
        %509 = vmatmul.f32.gmra.mxu0 %v466
        %v510 = vpop.f32.mrf.mxu0
        %v511 = vadd.f32 %v441, %v510
        %512 = vmatmul.f32.gmra.mxu0 %v469
        %v513 = vpop.f32.mrf.mxu0
        %v514 = vadd.f32 %v444, %v513
        %515 = vmatmul.f32.gmra.mxu0 %v472
        %v516 = vpop.f32.mrf.mxu0
        %v517 = vadd.f32 %v447, %v516
        %518 = vdwg.mxu0
        %v519 = vld [vmem:[%s4] sm:$0xff]
        %v520 = vld [vmem:[%s4 + $0x8] sm:$0xff]
        %v521 = vld [vmem:[%s4 + $0x10] sm:$0xff]
        %v522 = vld [vmem:[%s4 + $0x18] sm:$0xff]
        %v523 = vld [vmem:[%s4 + $0x20] sm:$0xff]
        %v524 = vld [vmem:[%s4 + $0x28] sm:$0xff]
        %v525 = vld [vmem:[%s4 + $0x30] sm:$0xff]
        %v526 = vld [vmem:[%s4 + $0x38] sm:$0xff]
        %528 = vset.pattern.permute.xlu0 0
        %529 = vperm.xlu0 %528, %v519
        %v530 = vpop.permute.xlu0 %529
        %533 = vset.pattern.permute.xlu0 0
        %534 = vperm.xlu0 %533, %v520
        %v535 = vpop.permute.xlu0 %534
        %538 = vset.pattern.permute.xlu0 0
        %539 = vperm.xlu0 %538, %v521
        %v540 = vpop.permute.xlu0 %539
        %543 = vset.pattern.permute.xlu0 0
        %544 = vperm.xlu0 %543, %v522
        %v545 = vpop.permute.xlu0 %544
        %548 = vset.pattern.permute.xlu0 0
        %549 = vperm.xlu0 %548, %v523
        %v550 = vpop.permute.xlu0 %549
        %553 = vset.pattern.permute.xlu0 0
        %554 = vperm.xlu0 %553, %v524
        %v555 = vpop.permute.xlu0 %554
        %558 = vset.pattern.permute.xlu0 0
        %559 = vperm.xlu0 %558, %v525
        %v560 = vpop.permute.xlu0 %559
        %563 = vset.pattern.permute.xlu0 0
        %564 = vperm.xlu0 %563, %v526
        %v565 = vpop.permute.xlu0 %564
        %v567 = vadd.f32 %v496, %v530
        %v568 = vadd.f32 %v499, %v535
        %v569 = vadd.f32 %v502, %v540
        %v570 = vadd.f32 %v505, %v545
        %v571 = vadd.f32 %v508, %v550
        %v572 = vadd.f32 %v511, %v555
        %v573 = vadd.f32 %v514, %v560
        %v574 = vadd.f32 %v517, %v565
        %v575 = vtanh.pop %v567
        %v576 = vtanh.pop %v568
        %v577 = vtanh.pop %v569
        %v578 = vtanh.pop %v570
        %v579 = vtanh.pop %v571
        %v580 = vtanh.pop %v572
        %v581 = vtanh.pop %v573
        %v582 = vtanh.pop %v574
        %v583 = vld [vmem:[%s5] sm:$0xff]
        %v584 = vld [vmem:[%s5 + $0x8] sm:$0x3f]
        %v585 = vld [vmem:[%s6] sm:$0xff]
        %v586 = vld [vmem:[%s6 + $0x8] sm:$0x3f]
        %vm587 = vcmask 523264
        %v589 = vsel %vm587, %v585, 0
        %v592 = vsel %vm587, %v586, 0
        %594 = vmatpush.msra.mxu0 0.0
        %595 = vmatpush.msra.mxu0 0.0
        %596 = vmatpush.msra.mxu0 0.0
        %597 = vmatpush.msra.mxu0 0.0
        %598 = vmatpush.msra.mxu0 0.0
        %599 = vmatpush.msra.mxu0 0.0
        %600 = vmatpush.msra.mxu0 0.0
        %601 = vmatpush.msra.mxu0 0.0
        %602 = vmatpush.msra.mxu0 %v582
        %603 = vmatpush.msra.mxu0 %v581
        %604 = vmatpush.msra.mxu0 %v580
        %605 = vmatpush.msra.mxu0 %v579
        %606 = vmatpush.msra.mxu0 %v578
        %607 = vmatpush.msra.mxu0 %v577
        %608 = vmatpush.msra.mxu0 %v576
        %609 = vmatpush.msra.mxu0 %v575
        %610 = vmatmul.f32.gmra.mxu0 %v589
        %v611 = vpop.f32.mrf.mxu0
        %v612 = vadd.f32 0.0, %v611
        %613 = vmatmul.f32.gmra.mxu0 %v592
        %v614 = vpop.f32.mrf.mxu0
        %v615 = vadd.f32 0.0, %v614
        %616 = vdwg.mxu0
        %v618 = vsel %vm449, %v583, 0
        %v621 = vsel %vm449, %v584, 0
        %623 = vmatpush.msra.mxu0 0.0
        %624 = vmatpush.msra.mxu0 0.0
        %625 = vmatpush.msra.mxu0 0.0
        %626 = vmatpush.msra.mxu0 0.0
        %627 = vmatpush.msra.mxu0 0.0
        %628 = vmatpush.msra.mxu0 0.0
        %629 = vmatpush.msra.mxu0 0.0
        %630 = vmatpush.msra.mxu0 0.0
        %631 = vmatpush.msra.mxu0 0.0
        %632 = vmatpush.msra.mxu0 0.0
        %633 = vmatpush.msra.mxu0 0.0
        %634 = vmatpush.msra.mxu0 0.0
        %635 = vmatpush.msra.mxu0 0.0
        %636 = vmatpush.msra.mxu0 0.0
        %637 = vmatpush.msra.mxu0 %v476
        %638 = vmatpush.msra.mxu0 %v360
        %639 = vmatmul.f32.gmra.mxu0 %v618
        %v640 = vpop.f32.mrf.mxu0
        %v641 = vadd.f32 %v612, %v640
        %642 = vmatmul.f32.gmra.mxu0 %v621
        %v643 = vpop.f32.mrf.mxu0
        %v644 = vadd.f32 %v615, %v643
        %645 = vdwg.mxu0
        %v646 = vld [vmem:[%s7] sm:$0xff]
        %v647 = vld [vmem:[%s7 + $0x8] sm:$0x3f]
        %649 = vset.pattern.permute.xlu0 0
        %650 = vperm.xlu0 %649, %v646
        %v651 = vpop.permute.xlu0 %650
        %654 = vset.pattern.permute.xlu0 0
        %655 = vperm.xlu0 %654, %v647
        %v656 = vpop.permute.xlu0 %655
        %v658 = vadd.f32 %v641, %v651
        %v659 = vadd.f32 %v644, %v656
        %660 = vst [vmem:[%s355] sm:$0xff] %v658
        %661 = vst [vmem:[%s355 + $0x8] sm:$0x3f] %v659
        %s662 = sand.u32 %s208, 1
        %s663 = scalar_lea.sflag [#allocation4], %s662
        %s664 = sand.u32 %s208, 1
        %s665 = smul.addr %s664, 16
        %s666 = scalar_lea.vmem [#allocation3], %s665
        // Predicated region
        $region91: #{tpu_custom_call.1} parent=85 // pred_check
          %p667 = pneg %p218
        $region92: #{tpu_custom_call.1} parent=85 // pred_check_branch
          %669 = sbr.rel (%p667) target = $region94
        $region93: #{tpu_custom_call.1} parent=85 // pred_region
          %671 = vsyncadd %s663, 0
          %s672 = smul.addr %s22, 8
          %s673 = scalar_lea.hbm %s8, %s672
          %s674 = sshll.u32 %s666, 4
          %s675 = int_to_ptr.vmem [resolvable:$true] %s674
          %s676 = sshll.u32 %s673, 4
          %s677 = int_to_ptr.hbm [resolvable:$true] %s676
          %682 = dma.vmem_to_hbm [thread:$0]  %s675, 256, %s677, %s663, 128, 256, 8
        $region94: #{tpu_custom_call.1} parent=85 // pred_fallthru
          _
      $region86: #{tpu_custom_call.1} parent=5 // pred_fallthru
        _
      %p683 = scmp.le.s32.totalorder 2, %s17
      // Predicated region
      $region95: #{tpu_custom_call.1} parent=5 // pred_check
        %p684 = pneg %p683
      $region96: #{tpu_custom_call.1} parent=5 // pred_check_branch
        %686 = sbr.rel (%p684) target = $region98
      $region97: #{tpu_custom_call.1} parent=5 // pred_region
        %s687 = ssub.s32 %s17, 2
        // Predicated region
        $region99: #{tpu_custom_call.1} parent=97 // pred_check
          %p688 = pneg %p224
        $region100: #{tpu_custom_call.1} parent=97 // pred_check_branch
          %690 = sbr.rel (%p688) target = $region102
        $region101: #{tpu_custom_call.1} parent=97 // pred_region
          %s691 = sand.u32 %s209, 1
          %s692 = scalar_lea.sflag [#allocation4], %s691
          %s693 = sand.u32 %s209, 1
          %s694 = smul.addr %s693, 16
          %s695 = scalar_lea.vmem [#allocation3], %s694
          %697 = dma.done %s692, 256
        $region102: #{tpu_custom_call.1} parent=97 // pred_fallthru
          _
      $region98: #{tpu_custom_call.1} parent=5 // pred_fallthru
        _
    $region6: #{tpu_custom_call.1} parent=1 // loop_footer
      %s21 = sadd.s32 1, %s17
    $region7: #{tpu_custom_call.1} parent=1 // loop_footer_branch
      %16 = sbr.rel target = $region3
    $region8: #{tpu_custom_call.1} parent=1 // loop_exit
      _
    %698 = vsyncpa [#allocation4], 1
    %s699 = scalar_lea.sflag [#allocation4], 1
    %700 = vsyncpa %s699, 1

</llo_original>
